<compile_context>
chip_gen: v5e
topology: v5e:2x2
jax: 0.10.0
libtpu: 0.0.40
codegen_flags: <defaults>
</compile_context>

<pallas_src>
import functools

import jax
import jax.numpy as jnp
from jax.experimental import pallas as pl
from jax.experimental.pallas import tpu as pltpu

_MIB = 1024 * 1024


# ----------------------------- sizing helpers --------------------------------

def _vmem_limit_bytes():
    """Per-generation scoped-VMEM budget (passed as vmem_limit_bytes)."""
    cap = 64 * _MIB                        # conservative fallback (v7x-sized)
    try:
        info = pltpu.get_tpu_info()
        cap = int(getattr(info, "vmem_capacity_bytes", cap) or cap)
    except Exception:
        pass
    # 3/4 of physical, capped: ~96 MiB on v5e/v6e (128 MiB), ~48 MiB on v7x (64 MiB).
    return min(cap * 3 // 4, 96 * _MIB)


def _choose_tiles(n, c, s, lane, itemsize, budget):
    """Pick (bn, s_blk): samples per block and spatial sublane-chunks per block.

    Prefers contiguous full-spatial slabs (one DMA per sample slab) and bounds
    the padded (bn, C, 1, 1) scale/shift VMEM buffers.
    """
    per_sample = c * s * lane * itemsize
    if per_sample <= budget:
        cap = budget // per_sample
        # (bn, C, 1, 1) f32 affine buffers pad to one (8,128) tile per (bn, c);
        # keep each under ~2 MiB so they never dominate VMEM.
        cap = min(cap, max(1, (2 * _MIB) // (c * 4096)))
        cap = max(1, min(cap, n))
        bn = max(d for d in range(1, cap + 1) if n % d == 0)
        return bn, s
    # Spatial tiling: sublane chunk count must be a multiple of 8 (or full S).
    best = None
    d = 8
    while d < s:
        if s % d == 0 and c * d * lane * itemsize <= budget:
            best = d
        d += 8
    if best is None:
        best = s   # pathological shapes (no valid divisor): single big block
    return 1, best


# ------------------------------ Pallas kernels --------------------------------

def _stats_kernel(x_ref, psum_ref, psq_ref):
    """Lane-preserving per-channel partial sum / sum-of-squares.

    x_ref:       (bn, C, s_blk, L) input tile
    psum / psq:  (1,  C, 1,     L) f32, output-resident accumulators across the
                 spatial grid axis (flushed to HBM once per batch tile).
    """
    @pl.when(pl.program_id(1) == 0)
    def _init():
        psum_ref[...] = jnp.zeros_like(psum_ref)
        psq_ref[...] = jnp.zeros_like(psq_ref)

    xb = x_ref[...].astype(jnp.float32)
    psum_ref[...] += jnp.sum(jnp.sum(xb, axis=2, keepdims=True),
                             axis=0, keepdims=True)
    psq_ref[...] += jnp.sum(jnp.sum(xb * xb, axis=2, keepdims=True),
                            axis=0, keepdims=True)


def _normalize_kernel(x_ref, scale_ref, shift_ref, o_ref):
    """o = x * scale + shift (scale/shift fold mean, rsqrt, gamma, beta)."""
    xb = x_ref[...].astype(jnp.float32)
    o_ref[...] = (xb * scale_ref[...] + shift_ref[...]).astype(o_ref.dtype)


def _fused_resident_kernel(x_ref, gamma_ref, beta_ref, o_ref, *, count, eps):
    """Single-read path: the whole activation is VMEM resident, so batch stats
    and the conditional affine are computed in one pass (x read once from HBM)."""
    xb = x_ref[...].astype(jnp.float32)                          # (N, C, S, L)
    s = jnp.sum(jnp.sum(xb, axis=3, keepdims=True), axis=2, keepdims=True)
    s = jnp.sum(s, axis=0, keepdims=True)                        # (1, C, 1, 1)
    sq = jnp.sum(jnp.sum(xb * xb, axis=3, keepdims=True), axis=2, keepdims=True)
    sq = jnp.sum(sq, axis=0, keepdims=True)                      # (1, C, 1, 1)
    inv_count = 1.0 / count
    mean = s * inv_count
    var = jnp.maximum(sq * inv_count - mean * mean, 0.0)         # clamp cancellation
    rinv = jax.lax.rsqrt(var + eps)
    scale = gamma_ref[...] * rinv                                # (N, C, 1, 1)
    shift = beta_ref[...] - mean * scale
    o_ref[...] = (xb * scale + shift).astype(o_ref.dtype)


# --------------------------------- wrapper ------------------------------------

def conditional_batch_norm_pallas(x, y, embed_weight, *, eps=1e-5,
                                  force_tiled=False):
    """x: (N, C, H, W); y: (N,) int class ids; embed_weight: (num_classes, 2C)."""
    n, c, h, w = x.shape
    hw = h * w
    num_classes, two_c = embed_weight.shape
    assert two_c == 2 * c, (embed_weight.shape, c)

    lane = 128 if hw % 128 == 0 else hw          # lane-dense whenever possible
    s_chunks = hw // lane
    x4 = x.reshape(n, c, s_chunks, lane)         # free reshape (contiguous)
    count = float(n * hw)
    itemsize = jnp.dtype(x.dtype).itemsize
    eps = float(eps)
    limit = _vmem_limit_bytes()

    # Embedding gather (N rows of 2C floats) is negligible -> plain XLA.
    gb = jnp.take(embed_weight, y.astype(jnp.int32), axis=0)    # (N, 2C)
    gamma = gb[:, :c].astype(jnp.float32)                       # (N, C)
    beta = gb[:, c:].astype(jnp.float32)                        # (N, C)

    # ---- single-read VMEM-resident specialization ---------------------------
    resident_bytes = (x.size * (2 * itemsize + 3 * 4)   # in + out + f32 temps
                      + 2 * n * c * 4096)               # padded (N,C,1,1) affine
    if (not force_tiled) and resident_bytes <= limit // 2:
        out4 = pl.pallas_call(
            functools.partial(_fused_resident_kernel, count=count, eps=eps),
            out_shape=jax.ShapeDtypeStruct(x4.shape, x.dtype),
            compiler_params=pltpu.CompilerParams(vmem_limit_bytes=limit),
        )(x4, gamma.reshape(n, c, 1, 1), beta.reshape(n, c, 1, 1))
        return out4.reshape(n, c, h, w)

    # ---- tiled two-pass path -------------------------------------------------
    tile_budget = min(8 * _MIB, limit // 8)       # ~8 MiB v5e/v6e, ~6 MiB v7x
    bn, s_blk = _choose_tiles(n, c, s_chunks, lane, itemsize, tile_budget)
    grid_n = n // bn
    grid_s = s_chunks // s_blk

    x_spec = pl.BlockSpec((bn, c, s_blk, lane), lambda i, j: (i, 0, j, 0))
    acc_spec = pl.BlockSpec((1, c, 1, lane), lambda i, j: (i, 0, 0, 0))
    aff_spec = pl.BlockSpec((bn, c, 1, 1), lambda i, j: (i, 0, 0, 0))

    # Pass 1: per-(batch-tile, channel) lane-preserving partial sums.
    psum, psq = pl.pallas_call(
        _stats_kernel,
        out_shape=(jax.ShapeDtypeStruct((grid_n, c, 1, lane), jnp.float32),
                   jax.ShapeDtypeStruct((grid_n, c, 1, lane), jnp.float32)),
        grid=(grid_n, grid_s),
        in_specs=[x_spec],
        out_specs=(acc_spec, acc_spec),
        compiler_params=pltpu.CompilerParams(
            dimension_semantics=("parallel", "arbitrary"),
            vmem_limit_bytes=limit),
    )(x4)

    # O(C) finalize in XLA: mean, clamped biased variance, rsqrt.
    total = jnp.sum(psum, axis=(0, 2, 3))                  # (C,)
    total_sq = jnp.sum(psq, axis=(0, 2, 3))                # (C,)
    mean = total / count
    var = jnp.maximum(total_sq / count - mean * mean, 0.0)
    rinv = jax.lax.rsqrt(var + eps)

    # Fold mean/rinv/gamma/beta into per-sample scale & shift (O(N*C)).
    scale = gamma * rinv[None, :]                          # (N, C)
    shift = beta - mean[None, :] * scale                   # (N, C)
    scale4 = scale.reshape(n, c, 1, 1)
    shift4 = shift.reshape(n, c, 1, 1)

    # Pass 2: streaming normalize + conditional affine, fully parallel grid
    # (megacore-sharded on v7x), lane-dense 128-wide stores.
    out4 = pl.pallas_call(
        _normalize_kernel,
        out_shape=jax.ShapeDtypeStruct(x4.shape, x.dtype),
        grid=(grid_n, grid_s),
        in_specs=[x_spec, aff_spec, aff_spec],
        out_specs=x_spec,
        compiler_params=pltpu.CompilerParams(
            dimension_semantics=("parallel", "parallel"),
            vmem_limit_bytes=limit),
    )(x4, scale4, shift4)

    return out4.reshape(n, c, h, w)


# ------------------------------ Module wrapper --------------------------------

class ConditionalBatchNorm:
    """JAX/Pallas equivalent of the torch ConditionalBatchNorm (forward only)."""

    def __init__(self, num_features, num_classes, key, eps=1e-5):
        self.num_features = num_features
        self.num_classes = num_classes
        self.eps = eps
        # embed.weight: (num_classes, 2*C); gamma ~ Normal(1, 0.02), beta = 0.
        gamma = 1.0 + 0.02 * jax.random.normal(
            key, (num_classes, num_features), jnp.float32)
        beta = jnp.zeros((num_classes, num_features), jnp.float32)
        self.embed_weight = jnp.concatenate([gamma, beta], axis=1)

    def __call__(self, x, y):
        return conditional_batch_norm_pallas(x, y, self.embed_weight,
                                              eps=self.eps)


# ----------------------------------- main --------------------------------------

if __name__ == "__main__":
    key = jax.random.PRNGKey(0)
    xkey, ykey, ekey = jax.random.split(key, 3)

    N, C, H, W = 2, 4, 16, 16
    num_classes = 10
    x = jax.random.normal(xkey, (N, C, H, W), jnp.float32)
    y = jax.random.randint(ykey, (N,), 0, num_classes, jnp.int32)

    layer = ConditionalBatchNorm(C, num_classes, key=ekey)

    # Pure-JAX reference: training-mode BN (batch stats, biased variance)
    # followed by the class-conditional affine.
    mean = jnp.mean(x, axis=(0, 2, 3))
    var = jnp.var(x, axis=(0, 2, 3))
    xn = (x - mean[None, :, None, None]) / jnp.sqrt(
        var[None, :, None, None] + layer.eps)
    gbsel = layer.embed_weight[y]
    gamma, beta = gbsel[:, :C], gbsel[:, C:]
    ref = gamma[:, :, None, None] * xn + beta[:, :, None, None]

    # Default dispatch (tiny working set -> single-read resident kernel).
    out_resident = jax.block_until_ready(layer(x, y))
    assert out_resident.shape == x.shape, out_resident.shape
    err_r = float(jnp.max(jnp.abs(out_resident - ref)))
    assert jnp.allclose(out_resident, ref, atol=1e-4, rtol=1e-4), err_r

    # Also exercise the tiled two-pass (stats + normalize) path.
    out_tiled = jax.block_until_ready(
        conditional_batch_norm_pallas(x, y, layer.embed_weight,
                                      eps=layer.eps, force_tiled=True))
    err_t = float(jnp.max(jnp.abs(out_tiled - ref)))
    assert jnp.allclose(out_tiled, ref, atol=1e-4, rtol=1e-4), err_t

    print("KERNEL_OK")
</pallas_src>

<mosaic_0001>
module attributes {stable_mosaic.version = 11 : i64} {
  func.func @_fused_resident_kernel(%arg0: memref<2x4x2x128xf32, #tpu.memory_space<vmem>>, %arg1: memref<2x4x1x1xf32, #tpu.memory_space<vmem>>, %arg2: memref<2x4x1x1xf32, #tpu.memory_space<vmem>>, %arg3: memref<2x4x2x128xf32, #tpu.memory_space<vmem>>) attributes {dimension_semantics = [], scalar_prefetch = 0 : i64, scratch_operands = 0 : i64, tpu.core_type = #tpu.core_type<tc>} {
    %c0 = arith.constant 0 : index
    %c0_0 = arith.constant 0 : index
    %c0_1 = arith.constant 0 : index
    %c0_2 = arith.constant 0 : index
    %0 = vector.load %arg0[%c0, %c0_0, %c0_1, %c0_2] : memref<2x4x2x128xf32, #tpu.memory_space<vmem>>, vector<2x4x2x128xf32>
    %cst = arith.constant dense<0.000000e+00> : vector<2x4x2xf32>
    %1 = vector.multi_reduction <add>, %0, %cst [3] : vector<2x4x2x128xf32> to vector<2x4x2xf32>
    %2 = vector.shape_cast %1 : vector<2x4x2xf32> to vector<2x4x2x1xf32>
    %cst_3 = arith.constant dense<0.000000e+00> : vector<2x4x1xf32>
    %3 = vector.multi_reduction <add>, %2, %cst_3 [2] : vector<2x4x2x1xf32> to vector<2x4x1xf32>
    %4 = vector.shape_cast %3 : vector<2x4x1xf32> to vector<2x4x1x1xf32>
    %cst_4 = arith.constant dense<0.000000e+00> : vector<4x1x1xf32>
    %5 = vector.multi_reduction <add>, %4, %cst_4 [0] : vector<2x4x1x1xf32> to vector<4x1x1xf32>
    %6 = vector.shape_cast %5 : vector<4x1x1xf32> to vector<1x4x1x1xf32>
    %7 = arith.mulf %0, %0 : vector<2x4x2x128xf32>
    %cst_5 = arith.constant dense<0.000000e+00> : vector<2x4x2xf32>
    %8 = vector.multi_reduction <add>, %7, %cst_5 [3] : vector<2x4x2x128xf32> to vector<2x4x2xf32>
    %9 = vector.shape_cast %8 : vector<2x4x2xf32> to vector<2x4x2x1xf32>
    %cst_6 = arith.constant dense<0.000000e+00> : vector<2x4x1xf32>
    %10 = vector.multi_reduction <add>, %9, %cst_6 [2] : vector<2x4x2x1xf32> to vector<2x4x1xf32>
    %11 = vector.shape_cast %10 : vector<2x4x1xf32> to vector<2x4x1x1xf32>
    %cst_7 = arith.constant dense<0.000000e+00> : vector<4x1x1xf32>
    %12 = vector.multi_reduction <add>, %11, %cst_7 [0] : vector<2x4x1x1xf32> to vector<4x1x1xf32>
    %13 = vector.shape_cast %12 : vector<4x1x1xf32> to vector<1x4x1x1xf32>
    %cst_8 = arith.constant 0.001953125 : f32
    %14 = vector.broadcast %cst_8 : f32 to vector<1x4x1x1xf32>
    %15 = arith.mulf %6, %14 : vector<1x4x1x1xf32>
    %cst_9 = arith.constant 0.001953125 : f32
    %16 = vector.broadcast %cst_9 : f32 to vector<1x4x1x1xf32>
    %17 = arith.mulf %13, %16 : vector<1x4x1x1xf32>
    %18 = arith.mulf %15, %15 : vector<1x4x1x1xf32>
    %19 = arith.subf %17, %18 : vector<1x4x1x1xf32>
    %cst_10 = arith.constant 0.000000e+00 : f32
    %20 = vector.broadcast %cst_10 : f32 to vector<1x4x1x1xf32>
    %21 = arith.maximumf %19, %20 : vector<1x4x1x1xf32>
    %cst_11 = arith.constant 9.99999974E-6 : f32
    %22 = vector.broadcast %cst_11 : f32 to vector<1x4x1x1xf32>
    %23 = arith.addf %21, %22 : vector<1x4x1x1xf32>
    %24 = math.rsqrt %23 : vector<1x4x1x1xf32>
    %c0_12 = arith.constant 0 : index
    %c0_13 = arith.constant 0 : index
    %c0_14 = arith.constant 0 : index
    %c0_15 = arith.constant 0 : index
    %25 = vector.load %arg1[%c0_12, %c0_13, %c0_14, %c0_15] : memref<2x4x1x1xf32, #tpu.memory_space<vmem>>, vector<2x4x1x1xf32>
    %26 = vector.broadcast %24 : vector<1x4x1x1xf32> to vector<2x4x1x1xf32>
    %27 = arith.mulf %25, %26 : vector<2x4x1x1xf32>
    %c0_16 = arith.constant 0 : index
    %c0_17 = arith.constant 0 : index
    %c0_18 = arith.constant 0 : index
    %c0_19 = arith.constant 0 : index
    %28 = vector.load %arg2[%c0_16, %c0_17, %c0_18, %c0_19] : memref<2x4x1x1xf32, #tpu.memory_space<vmem>>, vector<2x4x1x1xf32>
    %29 = vector.broadcast %15 : vector<1x4x1x1xf32> to vector<2x4x1x1xf32>
    %30 = arith.mulf %29, %27 : vector<2x4x1x1xf32>
    %31 = arith.subf %28, %30 : vector<2x4x1x1xf32>
    %32 = vector.broadcast %27 : vector<2x4x1x1xf32> to vector<2x4x2x128xf32>
    %33 = arith.mulf %0, %32 : vector<2x4x2x128xf32>
    %34 = vector.broadcast %31 : vector<2x4x1x1xf32> to vector<2x4x2x128xf32>
    %35 = arith.addf %33, %34 : vector<2x4x2x128xf32>
    %c0_20 = arith.constant 0 : index
    %c0_21 = arith.constant 0 : index
    %c0_22 = arith.constant 0 : index
    %c0_23 = arith.constant 0 : index
    %36 = vector.load %arg3[%c0_20, %c0_21, %c0_22, %c0_23] : memref<2x4x2x128xf32, #tpu.memory_space<vmem>>, vector<2x4x2x128xf32>
    tpu.vector_store %arg3[%c0_20, %c0_21, %c0_22, %c0_23], %35 {strides = array<i32>} : memref<2x4x2x128xf32, #tpu.memory_space<vmem>>, vector<2x4x2x128xf32>,
    return
  }
}

</mosaic_0001>

<llo_original>
// kernel: tpu_custom_call.1
$region0: #{tpu_custom_call.1}
  #allocation0 [shape = 'u32[]', space=smem, size = 0x4, offset = 0x4, fixed_abs, tag = 'smem constant byte address 0x4 - core index']
  #allocation1 [shape = 'u32[72,128]{1,0:T(1,128)}', space=vmem, size = 0x9000, scoped, tag = 'internal scratch']
  %s0 = inlined_call_operand.vmem [shape: f32[2,4,2,128], index: 0, kind: input, shape index: {}]
  %s1 = inlined_call_operand.vmem [shape: f32[2,4,1,1], index: 1, kind: input, shape index: {}]
  %s2 = inlined_call_operand.vmem [shape: f32[2,4,1,1], index: 2, kind: input, shape index: {}]
  %s3 = inlined_call_operand.hbm [shape: f32[2,4,2,128], index: 3, kind: output, shape index: {}]
  %s4 = sld [smem:[#allocation0]]
  $region22: #{tpu_custom_call.1} parent=0
    _
  %s6 = ssub.s32 1, %s4
  %s7 = scalar_select 0, %s6, %s4
  $region1: #{tpu_custom_call.1} parent=0
    #allocation2 [shape = 'u8[8192]{0}', space=vmem, size = 0x2000, scoped, tag = 'output window, operand 0, single buffered']
    #allocation3 [shape = 's32[1]{0}', space=sflag, size = 0x4, scoped, tag = 'scoped memory for tpu_custom_call.1']
    %8 = vsyncpa [#allocation3], 0
    // Predicated region
    $region2: #{tpu_custom_call.1} parent=1 // pred_check
      _
    $region3: #{tpu_custom_call.1} parent=1 // pred_check_branch
      %10 = sbr.rel (0) target = $region5
    $region4: #{tpu_custom_call.1} parent=1 // pred_region
      _
    $region5: #{tpu_custom_call.1} parent=1 // pred_fallthru
      _
    // Predicated region
    $region6: #{tpu_custom_call.1} parent=1 // pred_check
      _
    $region7: #{tpu_custom_call.1} parent=1 // pred_check_branch
      %12 = sbr.rel (0) target = $region9
    $region8: #{tpu_custom_call.1} parent=1 // pred_region
      _
    $region9: #{tpu_custom_call.1} parent=1 // pred_fallthru
      _
    // Predicated region
    $region10: #{tpu_custom_call.1} parent=1 // pred_check
      _
    $region11: #{tpu_custom_call.1} parent=1 // pred_check_branch
      %14 = sbr.rel (0) target = $region13
    $region12: #{tpu_custom_call.1} parent=1 // pred_region
      _
    $region13: #{tpu_custom_call.1} parent=1 // pred_fallthru
      _
    %v15 = vld [vmem:[%s0] sm:$0x3]
    %v16 = vld [vmem:[%s0 + $0x2] sm:$0x3]
    %v17 = vld [vmem:[%s0 + $0x4] sm:$0x3]
    %v18 = vld [vmem:[%s0 + $0x6] sm:$0x3]
    %v19 = vld [vmem:[%s0 + $0x8] sm:$0x3]
    %v20 = vld [vmem:[%s0 + $0xa] sm:$0x3]
    %v21 = vld [vmem:[%s0 + $0xc] sm:$0x3]
    %v22 = vld [vmem:[%s0 + $0xe] sm:$0x3]
    %vm23 = vcmask 1041408
    %v24 = vsel %vm23, %v15, 0.0
    %25 = vadd.xlane.f32.xlu0 %v24
    %v26 = vpop.xlane.xlu0 %25
    %v27 = vsel %vm23, %v16, 0.0
    %28 = vadd.xlane.f32.xlu0 %v27
    %v29 = vpop.xlane.xlu0 %28
    %v30 = vsel %vm23, %v17, 0.0
    %31 = vadd.xlane.f32.xlu0 %v30
    %v32 = vpop.xlane.xlu0 %31
    %v33 = vsel %vm23, %v18, 0.0
    %34 = vadd.xlane.f32.xlu0 %v33
    %v35 = vpop.xlane.xlu0 %34
    %v36 = vsel %vm23, %v19, 0.0
    %37 = vadd.xlane.f32.xlu0 %v36
    %v38 = vpop.xlane.xlu0 %37
    %v39 = vsel %vm23, %v20, 0.0
    %40 = vadd.xlane.f32.xlu0 %v39
    %v41 = vpop.xlane.xlu0 %40
    %v42 = vsel %vm23, %v21, 0.0
    %43 = vadd.xlane.f32.xlu0 %v42
    %v44 = vpop.xlane.xlu0 %43
    %v45 = vsel %vm23, %v22, 0.0
    %46 = vadd.xlane.f32.xlu0 %v45
    %v47 = vpop.xlane.xlu0 %46
    %v48 = vsel %vm23, %v26, 0.0
    %v49 = vrot.slane %v48, 4
    %v50 = vadd.f32 %v48, %v49
    %v51 = vrot.slane %v50, 2
    %v52 = vadd.f32 %v50, %v51
    %v53 = vrot.slane %v52, 1
    %v54 = vadd.f32 %v52, %v53
    %v55 = vsel %vm23, %v29, 0.0
    %v56 = vrot.slane %v55, 4
    %v57 = vadd.f32 %v55, %v56
    %v58 = vrot.slane %v57, 2
    %v59 = vadd.f32 %v57, %v58
    %v60 = vrot.slane %v59, 1
    %v61 = vadd.f32 %v59, %v60
    %v62 = vsel %vm23, %v32, 0.0
    %v63 = vrot.slane %v62, 4
    %v64 = vadd.f32 %v62, %v63
    %v65 = vrot.slane %v64, 2
    %v66 = vadd.f32 %v64, %v65
    %v67 = vrot.slane %v66, 1
    %v68 = vadd.f32 %v66, %v67
    %v69 = vsel %vm23, %v35, 0.0
    %v70 = vrot.slane %v69, 4
    %v71 = vadd.f32 %v69, %v70
    %v72 = vrot.slane %v71, 2
    %v73 = vadd.f32 %v71, %v72
    %v74 = vrot.slane %v73, 1
    %v75 = vadd.f32 %v73, %v74
    %v76 = vsel %vm23, %v38, 0.0
    %v77 = vrot.slane %v76, 4
    %v78 = vadd.f32 %v76, %v77
    %v79 = vrot.slane %v78, 2
    %v80 = vadd.f32 %v78, %v79
    %v81 = vrot.slane %v80, 1
    %v82 = vadd.f32 %v80, %v81
    %v83 = vsel %vm23, %v41, 0.0
    %v84 = vrot.slane %v83, 4
    %v85 = vadd.f32 %v83, %v84
    %v86 = vrot.slane %v85, 2
    %v87 = vadd.f32 %v85, %v86
    %v88 = vrot.slane %v87, 1
    %v89 = vadd.f32 %v87, %v88
    %v90 = vsel %vm23, %v44, 0.0
    %v91 = vrot.slane %v90, 4
    %v92 = vadd.f32 %v90, %v91
    %v93 = vrot.slane %v92, 2
    %v94 = vadd.f32 %v92, %v93
    %v95 = vrot.slane %v94, 1
    %v96 = vadd.f32 %v94, %v95
    %v97 = vsel %vm23, %v47, 0.0
    %v98 = vrot.slane %v97, 4
    %v99 = vadd.f32 %v97, %v98
    %v100 = vrot.slane %v99, 2
    %v101 = vadd.f32 %v99, %v100
    %v102 = vrot.slane %v101, 1
    %v103 = vadd.f32 %v101, %v102
    %v104 = vadd.f32 %v54, %v82
    %v105 = vadd.f32 %v61, %v89
    %v106 = vadd.f32 %v68, %v96
    %v107 = vadd.f32 %v75, %v103
    %v108 = vmul.f32 %v15, %v15
    %v109 = vmul.f32 %v16, %v16
    %v110 = vmul.f32 %v17, %v17
    %v111 = vmul.f32 %v18, %v18
    %v112 = vmul.f32 %v19, %v19
    %v113 = vmul.f32 %v20, %v20
    %v114 = vmul.f32 %v21, %v21
    %v115 = vmul.f32 %v22, %v22
    %v116 = vsel %vm23, %v108, 0.0
    %117 = vadd.xlane.f32.xlu0 %v116
    %v118 = vpop.xlane.xlu0 %117
    %v119 = vsel %vm23, %v109, 0.0
    %120 = vadd.xlane.f32.xlu0 %v119
    %v121 = vpop.xlane.xlu0 %120
    %v122 = vsel %vm23, %v110, 0.0
    %123 = vadd.xlane.f32.xlu0 %v122
    %v124 = vpop.xlane.xlu0 %123
    %v125 = vsel %vm23, %v111, 0.0
    %126 = vadd.xlane.f32.xlu0 %v125
    %v127 = vpop.xlane.xlu0 %126
    %v128 = vsel %vm23, %v112, 0.0
    %129 = vadd.xlane.f32.xlu0 %v128
    %v130 = vpop.xlane.xlu0 %129
    %v131 = vsel %vm23, %v113, 0.0
    %132 = vadd.xlane.f32.xlu0 %v131
    %v133 = vpop.xlane.xlu0 %132
    %v134 = vsel %vm23, %v114, 0.0
    %135 = vadd.xlane.f32.xlu0 %v134
    %v136 = vpop.xlane.xlu0 %135
    %v137 = vsel %vm23, %v115, 0.0
    %138 = vadd.xlane.f32.xlu0 %v137
    %v139 = vpop.xlane.xlu0 %138
    %v140 = vsel %vm23, %v118, 0.0
    %v141 = vrot.slane %v140, 4
    %v142 = vadd.f32 %v140, %v141
    %v143 = vrot.slane %v142, 2
    %v144 = vadd.f32 %v142, %v143
    %v145 = vrot.slane %v144, 1
    %v146 = vadd.f32 %v144, %v145
    %v147 = vsel %vm23, %v121, 0.0
    %v148 = vrot.slane %v147, 4
    %v149 = vadd.f32 %v147, %v148
    %v150 = vrot.slane %v149, 2
    %v151 = vadd.f32 %v149, %v150
    %v152 = vrot.slane %v151, 1
    %v153 = vadd.f32 %v151, %v152
    %v154 = vsel %vm23, %v124, 0.0
    %v155 = vrot.slane %v154, 4
    %v156 = vadd.f32 %v154, %v155
    %v157 = vrot.slane %v156, 2
    %v158 = vadd.f32 %v156, %v157
    %v159 = vrot.slane %v158, 1
    %v160 = vadd.f32 %v158, %v159
    %v161 = vsel %vm23, %v127, 0.0
    %v162 = vrot.slane %v161, 4
    %v163 = vadd.f32 %v161, %v162
    %v164 = vrot.slane %v163, 2
    %v165 = vadd.f32 %v163, %v164
    %v166 = vrot.slane %v165, 1
    %v167 = vadd.f32 %v165, %v166
    %v168 = vsel %vm23, %v130, 0.0
    %v169 = vrot.slane %v168, 4
    %v170 = vadd.f32 %v168, %v169
    %v171 = vrot.slane %v170, 2
    %v172 = vadd.f32 %v170, %v171
    %v173 = vrot.slane %v172, 1
    %v174 = vadd.f32 %v172, %v173
    %v175 = vsel %vm23, %v133, 0.0
    %v176 = vrot.slane %v175, 4
    %v177 = vadd.f32 %v175, %v176
    %v178 = vrot.slane %v177, 2
    %v179 = vadd.f32 %v177, %v178
    %v180 = vrot.slane %v179, 1
    %v181 = vadd.f32 %v179, %v180
    %v182 = vsel %vm23, %v136, 0.0
    %v183 = vrot.slane %v182, 4
    %v184 = vadd.f32 %v182, %v183
    %v185 = vrot.slane %v184, 2
    %v186 = vadd.f32 %v184, %v185
    %v187 = vrot.slane %v186, 1
    %v188 = vadd.f32 %v186, %v187
    %v189 = vsel %vm23, %v139, 0.0
    %v190 = vrot.slane %v189, 4
    %v191 = vadd.f32 %v189, %v190
    %v192 = vrot.slane %v191, 2
    %v193 = vadd.f32 %v191, %v192
    %v194 = vrot.slane %v193, 1
    %v195 = vadd.f32 %v193, %v194
    %v196 = vadd.f32 %v146, %v174
    %v197 = vadd.f32 %v153, %v181
    %v198 = vadd.f32 %v160, %v188
    %v199 = vadd.f32 %v167, %v195
    %v200 = vmul.f32 %v104, 0.001953125
    %v201 = vmul.f32 %v105, 0.001953125
    %v202 = vmul.f32 %v106, 0.001953125
    %v203 = vmul.f32 %v107, 0.001953125
    %v204 = vmul.f32 %v196, 0.001953125
    %v205 = vmul.f32 %v197, 0.001953125
    %v206 = vmul.f32 %v198, 0.001953125
    %v207 = vmul.f32 %v199, 0.001953125
    %v208 = vmul.f32 %v200, %v200
    %v209 = vmul.f32 %v201, %v201
    %v210 = vmul.f32 %v202, %v202
    %v211 = vmul.f32 %v203, %v203
    %v212 = vsub.f32 %v204, %v208
    %v213 = vsub.f32 %v205, %v209
    %v214 = vsub.f32 %v206, %v210
    %v215 = vsub.f32 %v207, %v211
    %v216 = vmax.f32 %v212, 0.0
    %v217 = vmax.f32 %v213, 0.0
    %v218 = vmax.f32 %v214, 0.0
    %v219 = vmax.f32 %v215, 0.0
    %v220 = vadd.f32 %v216, 1e-05
    %v221 = vadd.f32 %v217, 1e-05
    %v222 = vadd.f32 %v218, 1e-05
    %v223 = vadd.f32 %v219, 1e-05
    %v224 = vrsqrt.pop %v220
    %v225 = vmul.f32 %v224, %v220
    %v226 = vmul.f32 %v225, %v224
    %v227 = vmul.f32 0.5, %v226
    %v228 = vsub.f32 1.5, %v227
    %v229 = vmul.f32 %v224, %v228
    %vm230 = vweird.f32 %v220
    %vm231 = vweird.f32 %v224
    %vm232 = vmor %vm230, %vm231
    %v233 = vsel %vm232, %v224, %v229
    %v234 = vrsqrt.pop %v221
    %v235 = vmul.f32 %v234, %v221
    %v236 = vmul.f32 %v235, %v234
    %v237 = vmul.f32 0.5, %v236
    %v238 = vsub.f32 1.5, %v237
    %v239 = vmul.f32 %v234, %v238
    %vm240 = vweird.f32 %v221
    %vm241 = vweird.f32 %v234
    %vm242 = vmor %vm240, %vm241
    %v243 = vsel %vm242, %v234, %v239
    %v244 = vrsqrt.pop %v222
    %v245 = vmul.f32 %v244, %v222
    %v246 = vmul.f32 %v245, %v244
    %v247 = vmul.f32 0.5, %v246
    %v248 = vsub.f32 1.5, %v247
    %v249 = vmul.f32 %v244, %v248
    %vm250 = vweird.f32 %v222
    %vm251 = vweird.f32 %v244
    %vm252 = vmor %vm250, %vm251
    %v253 = vsel %vm252, %v244, %v249
    %v254 = vrsqrt.pop %v223
    %v255 = vmul.f32 %v254, %v223
    %v256 = vmul.f32 %v255, %v254
    %v257 = vmul.f32 0.5, %v256
    %v258 = vsub.f32 1.5, %v257
    %v259 = vmul.f32 %v254, %v258
    %vm260 = vweird.f32 %v223
    %vm261 = vweird.f32 %v254
    %vm262 = vmor %vm260, %vm261
    %v263 = vsel %vm262, %v254, %v259
    %v264 = vld [vmem:[%s1] sm:$0x1]
    %v265 = vld [vmem:[%s1 + $0x1] sm:$0x1]
    %v266 = vld [vmem:[%s1 + $0x2] sm:$0x1]
    %v267 = vld [vmem:[%s1 + $0x3] sm:$0x1]
    %v268 = vld [vmem:[%s1 + $0x4] sm:$0x1]
    %v269 = vld [vmem:[%s1 + $0x5] sm:$0x1]
    %v270 = vld [vmem:[%s1 + $0x6] sm:$0x1]
    %v271 = vld [vmem:[%s1 + $0x7] sm:$0x1]
    %v272 = vmul.f32 %v264, %v233
    %v273 = vmul.f32 %v265, %v243
    %v274 = vmul.f32 %v266, %v253
    %v275 = vmul.f32 %v267, %v263
    %v276 = vmul.f32 %v268, %v233
    %v277 = vmul.f32 %v269, %v243
    %v278 = vmul.f32 %v270, %v253
    %v279 = vmul.f32 %v271, %v263
    %v280 = vld [vmem:[%s2] sm:$0x1]
    %v281 = vld [vmem:[%s2 + $0x1] sm:$0x1]
    %v282 = vld [vmem:[%s2 + $0x2] sm:$0x1]
    %v283 = vld [vmem:[%s2 + $0x3] sm:$0x1]
    %v284 = vld [vmem:[%s2 + $0x4] sm:$0x1]
    %v285 = vld [vmem:[%s2 + $0x5] sm:$0x1]
    %v286 = vld [vmem:[%s2 + $0x6] sm:$0x1]
    %v287 = vld [vmem:[%s2 + $0x7] sm:$0x1]
    %v288 = vmul.f32 %v200, %v272
    %v289 = vmul.f32 %v201, %v273
    %v290 = vmul.f32 %v202, %v274
    %v291 = vmul.f32 %v203, %v275
    %v292 = vmul.f32 %v200, %v276
    %v293 = vmul.f32 %v201, %v277
    %v294 = vmul.f32 %v202, %v278
    %v295 = vmul.f32 %v203, %v279
    %v296 = vsub.f32 %v280, %v288
    %v297 = vsub.f32 %v281, %v289
    %v298 = vsub.f32 %v282, %v290
    %v299 = vsub.f32 %v283, %v291
    %v300 = vsub.f32 %v284, %v292
    %v301 = vsub.f32 %v285, %v293
    %v302 = vsub.f32 %v286, %v294
    %v303 = vsub.f32 %v287, %v295
    %v312 = vperm.slane %v272, 0
    %v313 = vperm.slane %v273, 0
    %v314 = vperm.slane %v274, 0
    %v315 = vperm.slane %v275, 0
    %v316 = vperm.slane %v276, 0
    %v317 = vperm.slane %v277, 0
    %v318 = vperm.slane %v278, 0
    %v319 = vperm.slane %v279, 0
    %320 = vset.pattern.permute.xlu0 0
    %321 = vperm.xlu0 %320, %v312
    %v322 = vpop.permute.xlu0 %321
    %324 = vset.pattern.permute.xlu0 0
    %325 = vperm.xlu0 %324, %v313
    %v326 = vpop.permute.xlu0 %325
    %328 = vset.pattern.permute.xlu0 0
    %329 = vperm.xlu0 %328, %v314
    %v330 = vpop.permute.xlu0 %329
    %332 = vset.pattern.permute.xlu0 0
    %333 = vperm.xlu0 %332, %v315
    %v334 = vpop.permute.xlu0 %333
    %336 = vset.pattern.permute.xlu0 0
    %337 = vperm.xlu0 %336, %v316
    %v338 = vpop.permute.xlu0 %337
    %340 = vset.pattern.permute.xlu0 0
    %341 = vperm.xlu0 %340, %v317
    %v342 = vpop.permute.xlu0 %341
    %344 = vset.pattern.permute.xlu0 0
    %345 = vperm.xlu0 %344, %v318
    %v346 = vpop.permute.xlu0 %345
    %348 = vset.pattern.permute.xlu0 0
    %349 = vperm.xlu0 %348, %v319
    %v350 = vpop.permute.xlu0 %349
    %v352 = vmul.f32 %v15, %v322
    %v353 = vmul.f32 %v16, %v326
    %v354 = vmul.f32 %v17, %v330
    %v355 = vmul.f32 %v18, %v334
    %v356 = vmul.f32 %v19, %v338
    %v357 = vmul.f32 %v20, %v342
    %v358 = vmul.f32 %v21, %v346
    %v359 = vmul.f32 %v22, %v350
    %v368 = vperm.slane %v296, 0
    %v369 = vperm.slane %v297, 0
    %v370 = vperm.slane %v298, 0
    %v371 = vperm.slane %v299, 0
    %v372 = vperm.slane %v300, 0
    %v373 = vperm.slane %v301, 0
    %v374 = vperm.slane %v302, 0
    %v375 = vperm.slane %v303, 0
    %376 = vset.pattern.permute.xlu0 0
    %377 = vperm.xlu0 %376, %v368
    %v378 = vpop.permute.xlu0 %377
    %380 = vset.pattern.permute.xlu0 0
    %381 = vperm.xlu0 %380, %v369
    %v382 = vpop.permute.xlu0 %381
    %384 = vset.pattern.permute.xlu0 0
    %385 = vperm.xlu0 %384, %v370
    %v386 = vpop.permute.xlu0 %385
    %388 = vset.pattern.permute.xlu0 0
    %389 = vperm.xlu0 %388, %v371
    %v390 = vpop.permute.xlu0 %389
    %392 = vset.pattern.permute.xlu0 0
    %393 = vperm.xlu0 %392, %v372
    %v394 = vpop.permute.xlu0 %393
    %396 = vset.pattern.permute.xlu0 0
    %397 = vperm.xlu0 %396, %v373
    %v398 = vpop.permute.xlu0 %397
    %400 = vset.pattern.permute.xlu0 0
    %401 = vperm.xlu0 %400, %v374
    %v402 = vpop.permute.xlu0 %401
    %404 = vset.pattern.permute.xlu0 0
    %405 = vperm.xlu0 %404, %v375
    %v406 = vpop.permute.xlu0 %405
    %v408 = vadd.f32 %v352, %v378
    %v409 = vadd.f32 %v353, %v382
    %v410 = vadd.f32 %v354, %v386
    %v411 = vadd.f32 %v355, %v390
    %v412 = vadd.f32 %v356, %v394
    %v413 = vadd.f32 %v357, %v398
    %v414 = vadd.f32 %v358, %v402
    %v415 = vadd.f32 %v359, %v406
    %416 = vst [vmem:[#allocation2] sm:$0x3] %v408
    %417 = vst [vmem:[#allocation2 + $0x2] sm:$0x3] %v409
    %418 = vst [vmem:[#allocation2 + $0x4] sm:$0x3] %v410
    %419 = vst [vmem:[#allocation2 + $0x6] sm:$0x3] %v411
    %420 = vst [vmem:[#allocation2 + $0x8] sm:$0x3] %v412
    %421 = vst [vmem:[#allocation2 + $0xa] sm:$0x3] %v413
    %422 = vst [vmem:[#allocation2 + $0xc] sm:$0x3] %v414
    %423 = vst [vmem:[#allocation2 + $0xe] sm:$0x3] %v415
    // Predicated region
    $region14: #{tpu_custom_call.1} parent=1 // pred_check
      _
    $region15: #{tpu_custom_call.1} parent=1 // pred_check_branch
      %425 = sbr.rel (0) target = $region17
    $region16: #{tpu_custom_call.1} parent=1 // pred_region
      %427 = vsyncadd [#allocation3], 0
      %s428 = sshll.u32 [#allocation2], 4
      %s429 = int_to_ptr.vmem [resolvable:$true] %s428
      %s430 = sshll.u32 %s3, 4
      %s431 = int_to_ptr.hbm [resolvable:$true] %s430
      %436 = dma.vmem_to_hbm [thread:$0]  %s429, 256, %s431, [#allocation3], 32, 32, 2
    $region17: #{tpu_custom_call.1} parent=1 // pred_fallthru
      _
    // Predicated region
    $region18: #{tpu_custom_call.1} parent=1 // pred_check
      _
    $region19: #{tpu_custom_call.1} parent=1 // pred_check_branch
      %438 = sbr.rel (0) target = $region21
    $region20: #{tpu_custom_call.1} parent=1 // pred_region
      %440 = dma.done [#allocation3], 256
    $region21: #{tpu_custom_call.1} parent=1 // pred_fallthru
      _
    %441 = vsyncpa [#allocation3], 1

</llo_original>
